<compile_context>
chip_gen: v6e
topology: v6e:2x2x1
jax: 0.10.0
libtpu: 0.0.40
codegen_flags: <defaults>
</compile_context>

<pallas_src>
import functools

import jax
import jax.numpy as jnp
from jax.experimental import pallas as pl
from jax.experimental.pallas import tpu as pltpu


def _lstm_recurrence_kernel(xproj_ref, wh_ref, wp_ref, bp_ref, out_ref,
                            h_scr, c_scr, *, t_total, time_chunk, masked,
                            unroll):
    """One grid step = one (batch tile, time chunk) of the LSTM recurrence.

    xproj_ref : (Tt, Bt, 4H) bf16  precomputed x@Wx + b for this chunk
    wh_ref    : (H, 4H)      bf16  packed hidden->gate weights (i|f|g|o cols)
    wp_ref    : (H, P)       bf16  predictor weight, lane-padded to P=128
    bp_ref    : (1, P)       f32   predictor bias, lane-padded
    out_ref   : (Bt, P)      f32   logits for this batch tile (real at [:, :2])
    h_scr     : (Bt, H)      f32   hidden state (persists across time chunks)
    c_scr     : (Bt, H)      f32   cell state   (persists across time chunks)
    """
    Tt = xproj_ref.shape[0]
    H = wh_ref.shape[0]

    t_chunk = pl.program_id(1)

    @pl.when(t_chunk == 0)
    def _():
        h_scr[...] = jnp.zeros_like(h_scr)
        c_scr[...] = jnp.zeros_like(c_scr)

    wh = wh_ref[...]                                    # (H, 4H) bf16, resident

    def step(t, carry):
        # Single packed gate matmul: (Bt, H) x (H, 4H), lane-dense output.
        gates = xproj_ref[t].astype(jnp.float32) + jnp.dot(
            h_scr[...].astype(jnp.bfloat16), wh,
            preferred_element_type=jnp.float32)          # (Bt, 4H) f32
        # Full-width nonlinearities (2 EUP pushes), then static gate slices.
        sig = jax.nn.sigmoid(gates)
        tnh = jnp.tanh(gates)
        i_g = sig[:, 0 * H:1 * H]
        f_g = sig[:, 1 * H:2 * H]
        g_g = tnh[:, 2 * H:3 * H]
        o_g = sig[:, 3 * H:4 * H]
        c_new = f_g * c_scr[...] + i_g * g_g
        h_new = o_g * jnp.tanh(c_new)
        if masked:
            valid = (t_chunk * time_chunk + t) < t_total
            c_new = jnp.where(valid, c_new, c_scr[...])
            h_new = jnp.where(valid, h_new, h_scr[...])
        c_scr[...] = c_new
        h_scr[...] = h_new
        return carry

    jax.lax.fori_loop(0, Tt, step, 0, unroll=unroll)

    @pl.when(t_chunk == pl.num_programs(1) - 1)
    def _():
        out_ref[...] = (jnp.dot(h_scr[...].astype(jnp.bfloat16), wp_ref[...],
                                preferred_element_type=jnp.float32)
                        + bp_ref[...])


def simple_bilstm_baseline_forward(seq, params, *, time_chunk=None,
                                   batch_tile=None):
    """Forward pass matching SimpleBiLSTMBaseline.forward (num_linear=1).

    seq: (T, B) int32 token ids (time-major, like PyTorch nn.LSTM default).
    Returns (B, 2) float32 logits.
    """
    emb_table = params["embedding"]          # (V, E)
    w_ih = params["w_ih"]                    # (4H, E)  PyTorch layout (i|f|g|o rows)
    w_hh = params["w_hh"]                    # (4H, H)
    b_ih = params["b_ih"]                    # (4H,)
    b_hh = params["b_hh"]                    # (4H,)
    w_pred = params["w_pred"]                # (2, H)
    b_pred = params["b_pred"]                # (2,)

    T, B = seq.shape
    E = emb_table.shape[1]
    H = w_hh.shape[1]
    H4 = 4 * H
    P = 128                                  # lane-padded predictor output width

    # ---- batch tiling (sublane multiple of 8; tile axis is "parallel") ----
    Bp = max(8, ((B + 7) // 8) * 8)
    if batch_tile is None:
        batch_tile = min(Bp, 256)
    Bt = max(8, ((batch_tile + 7) // 8) * 8)
    while Bp % Bt != 0:
        Bt -= 8
    nb = Bp // Bt

    # ---- time chunking (ragged T allowed; padded steps masked in-kernel) ----
    if time_chunk is None:
        time_chunk = min(T, 16)
    Tt = max(1, int(time_chunk))
    # keep the double-buffered streamed xproj chunk within a modest VMEM budget
    while Tt > 1 and 2 * Tt * Bt * H4 * 2 > (8 << 20):
        Tt //= 2
    n_chunks = -(-T // Tt)
    Tp = n_chunks * Tt
    masked = (Tp != T)
    unroll = min(Tt, 8)

    # ---- glue: gather in bf16, externalized input projection (plain JAX) ----
    emb = jnp.take(emb_table.astype(jnp.bfloat16), seq, axis=0)   # (T, B, E) bf16
    emb = jnp.pad(emb, ((0, Tp - T), (0, Bp - B), (0, 0)))

    # PyTorch packs gate rows as [i; f; g; o] along dim 0, so x @ w_ih.T gives
    # columns already ordered i|f|g|o -> packed weights are just transposes.
    wx = w_ih.T.astype(jnp.bfloat16)                              # (E, 4H)
    wh = w_hh.T.astype(jnp.bfloat16)                              # (H, 4H)
    bias_g = (b_ih + b_hh).reshape(1, H4).astype(jnp.float32)     # (1, 4H)

    xproj = jnp.dot(emb.reshape(Tp * Bp, E), wx,
                    preferred_element_type=jnp.float32) + bias_g
    xproj = xproj.astype(jnp.bfloat16).reshape(Tp, Bp, H4)        # streamed operand

    wp = jnp.zeros((H, P), jnp.float32).at[:, :2].set(w_pred.T).astype(jnp.bfloat16)
    bp = jnp.zeros((1, P), jnp.float32).at[:, :2].set(b_pred)

    kernel = functools.partial(_lstm_recurrence_kernel,
                               t_total=T, time_chunk=Tt, masked=masked,
                               unroll=unroll)

    # explicit VMEM budget (double-buffered streamed chunk + weights + state)
    vmem_need = (2 * Tt * Bt * H4 * 2            # xproj chunk (bf16), 2 buffers
                 + 2 * (H * H4 + H * P) * 2      # wh, wp (bf16), 2 buffers
                 + 2 * P * 4                     # bp
                 + 2 * Bt * P * 4                # out block
                 + 2 * Bt * H * 4)               # h/c scratch
    vmem_limit = int(min(48 << 20, max(16 << 20, 2 * vmem_need)))

    out = pl.pallas_call(
        kernel,
        out_shape=jax.ShapeDtypeStruct((Bp, P), jnp.float32),
        grid=(nb, n_chunks),
        in_specs=[
            pl.BlockSpec((Tt, Bt, H4), lambda b_, t_: (t_, b_, 0)),  # streamed
            pl.BlockSpec((H, H4), lambda b_, t_: (0, 0)),            # resident weights
            pl.BlockSpec((H, P), lambda b_, t_: (0, 0)),
            pl.BlockSpec((1, P), lambda b_, t_: (0, 0)),
        ],
        out_specs=pl.BlockSpec((Bt, P), lambda b_, t_: (b_, 0)),
        scratch_shapes=[
            pltpu.VMEM((Bt, H), jnp.float32),    # h (carried across time chunks)
            pltpu.VMEM((Bt, H), jnp.float32),    # c (carried across time chunks)
        ],
        compiler_params=pltpu.CompilerParams(
            dimension_semantics=("parallel", "arbitrary"),
            vmem_limit_bytes=vmem_limit),
    )(xproj, wh, wp, bp)

    return out[:B, :2]


def _init_params(key, vocab_size, emb_dim, hidden_dim):
    ks = jax.random.split(key, 7)
    s = 0.1
    return {
        "embedding": s * jax.random.normal(ks[0], (vocab_size, emb_dim), jnp.float32),
        "w_ih": s * jax.random.normal(ks[1], (4 * hidden_dim, emb_dim), jnp.float32),
        "w_hh": s * jax.random.normal(ks[2], (4 * hidden_dim, hidden_dim), jnp.float32),
        "b_ih": s * jax.random.normal(ks[3], (4 * hidden_dim,), jnp.float32),
        "b_hh": s * jax.random.normal(ks[4], (4 * hidden_dim,), jnp.float32),
        "w_pred": s * jax.random.normal(ks[5], (2, hidden_dim), jnp.float32),
        "b_pred": s * jax.random.normal(ks[6], (2,), jnp.float32),
    }


def _reference_forward(seq, params):
    """Pure-JAX f32 reference (mirrors PyTorch semantics)."""
    emb = jnp.take(params["embedding"], seq, axis=0)              # (T, B, E)
    H = params["w_hh"].shape[1]
    w_ih, w_hh = params["w_ih"], params["w_hh"]
    b = params["b_ih"] + params["b_hh"]

    def step(carry, x_t):
        h, c = carry
        gates = x_t @ w_ih.T + h @ w_hh.T + b                     # (B, 4H)
        i_g, f_g, g_g, o_g = jnp.split(gates, 4, axis=-1)
        i_g = jax.nn.sigmoid(i_g)
        f_g = jax.nn.sigmoid(f_g)
        g_g = jnp.tanh(g_g)
        o_g = jax.nn.sigmoid(o_g)
        c = f_g * c + i_g * g_g
        h = o_g * jnp.tanh(c)
        return (h, c), None

    B = seq.shape[1]
    h0 = jnp.zeros((B, H), jnp.float32)
    c0 = jnp.zeros((B, H), jnp.float32)
    (h_last, _), _ = jax.lax.scan(step, (h0, c0), emb)
    return h_last @ params["w_pred"].T + params["b_pred"]


if __name__ == "__main__":
    key = jax.random.PRNGKey(0)
    k_param, k_seq, k_seq2 = jax.random.split(key, 3)

    VOCAB, EMB, HIDDEN = 50, 32, 32
    params = _init_params(k_param, VOCAB, EMB, HIDDEN)

    # Test 1: T divisible by time_chunk -> grid=(1, 2), carried h/c state.
    T, B = 8, 2
    seq = jax.random.randint(k_seq, (T, B), 0, VOCAB, dtype=jnp.int32)
    logits = jax.block_until_ready(
        simple_bilstm_baseline_forward(seq, params, time_chunk=4))
    ref = jax.block_until_ready(_reference_forward(seq, params))
    assert logits.shape == (B, 2)
    # bf16 matmul operands / bf16 streamed xproj -> slightly looser tolerance.
    assert jnp.allclose(logits, ref, atol=2e-2, rtol=2e-2), (logits, ref)

    # Test 2: ragged T (padded + masked steps) and 2 batch tiles on the
    # "parallel" grid axis (v7x megacore path); grid=(2, 2).
    T2, B2 = 7, 12
    seq2 = jax.random.randint(k_seq2, (T2, B2), 0, VOCAB, dtype=jnp.int32)
    logits2 = jax.block_until_ready(
        simple_bilstm_baseline_forward(seq2, params, time_chunk=4, batch_tile=8))
    ref2 = jax.block_until_ready(_reference_forward(seq2, params))
    assert logits2.shape == (B2, 2)
    assert jnp.allclose(logits2, ref2, atol=2e-2, rtol=2e-2), (logits2, ref2)

    print("KERNEL_OK")
</pallas_src>

<mosaic_0001>
module attributes {stable_mosaic.version = 11 : i64} {
  func.func @_lstm_recurrence_kernel(%arg0: i32, %arg1: i32, %arg2: memref<4x8x128xbf16, #tpu.memory_space<vmem>>, %arg3: memref<32x128xbf16, #tpu.memory_space<vmem>>, %arg4: memref<32x128xbf16, #tpu.memory_space<vmem>>, %arg5: memref<1x128xf32, #tpu.memory_space<vmem>>, %arg6: memref<8x128xf32, #tpu.memory_space<vmem>>, %arg7: memref<8x32xf32, #tpu.memory_space<vmem>>, %arg8: memref<8x32xf32, #tpu.memory_space<vmem>>) attributes {dimension_semantics = [#tpu.dimension_semantics<parallel>, #tpu.dimension_semantics<arbitrary>], iteration_bounds = array<i64: 1, 2>, scalar_prefetch = 0 : i64, scratch_operands = 2 : i64, tpu.core_type = #tpu.core_type<tc>, window_params = [{transform_indices = @transform_0, window_bounds = array<i64: 4, 8, 128>}, {pipeline_mode = #tpu.pipeline_mode<synchronous>, transform_indices = @transform_1, window_bounds = array<i64: 32, 128>}, {pipeline_mode = #tpu.pipeline_mode<synchronous>, transform_indices = @transform_2, window_bounds = array<i64: 32, 128>}, {pipeline_mode = #tpu.pipeline_mode<synchronous>, transform_indices = @transform_3, window_bounds = array<i64: 1, 128>}, {transform_indices = @transform_4, window_bounds = array<i64: 8, 128>}]} {
    %c0_i32 = arith.constant 0 : i32
    %0 = arith.cmpi eq, %arg1, %c0_i32 : i32
    %1 = arith.extui %0 : i1 to i32
    %c0_i32_0 = arith.constant 0 : i32
    %2 = arith.cmpi ne, %1, %c0_i32_0 : i32
    scf.if %2 {
      %cst_52 = arith.constant 0.000000e+00 : f32
      %111 = vector.broadcast %cst_52 : f32 to vector<8x32xf32>
      %c0_53 = arith.constant 0 : index
      %c0_54 = arith.constant 0 : index
      %112 = vector.load %arg7[%c0_53, %c0_54] : memref<8x32xf32, #tpu.memory_space<vmem>>, vector<8x32xf32>
      tpu.vector_store %arg7[%c0_53, %c0_54], %111 {strides = array<i32>} : memref<8x32xf32, #tpu.memory_space<vmem>>, vector<8x32xf32>,
      %cst_55 = arith.constant 0.000000e+00 : f32
      %113 = vector.broadcast %cst_55 : f32 to vector<8x32xf32>
      %c0_56 = arith.constant 0 : index
      %c0_57 = arith.constant 0 : index
      %114 = vector.load %arg8[%c0_56, %c0_57] : memref<8x32xf32, #tpu.memory_space<vmem>>, vector<8x32xf32>
      tpu.vector_store %arg8[%c0_56, %c0_57], %113 {strides = array<i32>} : memref<8x32xf32, #tpu.memory_space<vmem>>, vector<8x32xf32>,
    } else {
    }
    %c0 = arith.constant 0 : index
    %c0_1 = arith.constant 0 : index
    %3 = vector.load %arg3[%c0, %c0_1] : memref<32x128xbf16, #tpu.memory_space<vmem>>, vector<32x128xbf16>
    %c0_i32_2 = arith.constant 0 : i32
    %4 = arith.index_cast %c0_i32_2 : i32 to index
    %c0_3 = arith.constant 0 : index
    %c0_4 = arith.constant 0 : index
    %5 = vector.load %arg2[%4, %c0_3, %c0_4] : memref<4x8x128xbf16, #tpu.memory_space<vmem>>, vector<1x8x128xbf16>
    %6 = vector.shape_cast %5 : vector<1x8x128xbf16> to vector<8x128xbf16>
    %7 = arith.extf %6 : vector<8x128xbf16> to vector<8x128xf32>
    %c0_5 = arith.constant 0 : index
    %c0_6 = arith.constant 0 : index
    %8 = vector.load %arg7[%c0_5, %c0_6] : memref<8x32xf32, #tpu.memory_space<vmem>>, vector<8x32xf32>
    %9 = arith.truncf %8 : vector<8x32xf32> to vector<8x32xbf16>
    %cst = arith.constant dense<0.000000e+00> : vector<8x128xf32>
    %10 = tpu.matmul %9, %3, %cst {dimension_numbers = #tpu.dot_dimension_numbers<[1], [0], [0], [1], [0, 0, 1, 1], [], []>} : vector<8x32xbf16>, vector<32x128xbf16>, vector<8x128xf32> -> vector<8x128xf32>
    %11 = arith.addf %7, %10 : vector<8x128xf32>
    %12 = arith.negf %11 : vector<8x128xf32>
    %13 = math.exp %12 : vector<8x128xf32>
    %cst_7 = arith.constant 1.000000e+00 : f32
    %14 = vector.broadcast %cst_7 : f32 to vector<8x128xf32>
    %15 = arith.addf %14, %13 : vector<8x128xf32>
    %16 = arith.divf %14, %15 : vector<8x128xf32>
    %17 = math.tanh %11 : vector<8x128xf32>
    %18 = vector.extract_strided_slice %16 {offsets = [0, 0], sizes = [8, 32], strides = [1, 1]} : vector<8x128xf32> to vector<8x32xf32>
    %19 = vector.extract_strided_slice %16 {offsets = [0, 32], sizes = [8, 32], strides = [1, 1]} : vector<8x128xf32> to vector<8x32xf32>
    %20 = vector.extract_strided_slice %17 {offsets = [0, 64], sizes = [8, 32], strides = [1, 1]} : vector<8x128xf32> to vector<8x32xf32>
    %21 = vector.extract_strided_slice %16 {offsets = [0, 96], sizes = [8, 32], strides = [1, 1]} : vector<8x128xf32> to vector<8x32xf32>
    %c0_8 = arith.constant 0 : index
    %c0_9 = arith.constant 0 : index
    %22 = vector.load %arg8[%c0_8, %c0_9] : memref<8x32xf32, #tpu.memory_space<vmem>>, vector<8x32xf32>
    %23 = arith.mulf %19, %22 : vector<8x32xf32>
    %24 = arith.mulf %18, %20 : vector<8x32xf32>
    %25 = arith.addf %23, %24 : vector<8x32xf32>
    %26 = math.tanh %25 : vector<8x32xf32>
    %27 = arith.mulf %21, %26 : vector<8x32xf32>
    %c0_10 = arith.constant 0 : index
    %c0_11 = arith.constant 0 : index
    %28 = vector.load %arg8[%c0_10, %c0_11] : memref<8x32xf32, #tpu.memory_space<vmem>>, vector<8x32xf32>
    tpu.vector_store %arg8[%c0_10, %c0_11], %25 {strides = array<i32>} : memref<8x32xf32, #tpu.memory_space<vmem>>, vector<8x32xf32>,
    %c0_12 = arith.constant 0 : index
    %c0_13 = arith.constant 0 : index
    %29 = vector.load %arg7[%c0_12, %c0_13] : memref<8x32xf32, #tpu.memory_space<vmem>>, vector<8x32xf32>
    tpu.vector_store %arg7[%c0_12, %c0_13], %27 {strides = array<i32>} : memref<8x32xf32, #tpu.memory_space<vmem>>, vector<8x32xf32>,
    %c1_i32 = arith.constant 1 : i32
    %30 = arith.index_cast %c1_i32 : i32 to index
    %c0_14 = arith.constant 0 : index
    %c0_15 = arith.constant 0 : index
    %31 = vector.load %arg2[%30, %c0_14, %c0_15] : memref<4x8x128xbf16, #tpu.memory_space<vmem>>, vector<1x8x128xbf16>
    %32 = vector.shape_cast %31 : vector<1x8x128xbf16> to vector<8x128xbf16>
    %33 = arith.extf %32 : vector<8x128xbf16> to vector<8x128xf32>
    %c0_16 = arith.constant 0 : index
    %c0_17 = arith.constant 0 : index
    %34 = vector.load %arg7[%c0_16, %c0_17] : memref<8x32xf32, #tpu.memory_space<vmem>>, vector<8x32xf32>
    %35 = arith.truncf %34 : vector<8x32xf32> to vector<8x32xbf16>
    %cst_18 = arith.constant dense<0.000000e+00> : vector<8x128xf32>
    %36 = tpu.matmul %35, %3, %cst_18 {dimension_numbers = #tpu.dot_dimension_numbers<[1], [0], [0], [1], [0, 0, 1, 1], [], []>} : vector<8x32xbf16>, vector<32x128xbf16>, vector<8x128xf32> -> vector<8x128xf32>
    %37 = arith.addf %33, %36 : vector<8x128xf32>
    %38 = arith.negf %37 : vector<8x128xf32>
    %39 = math.exp %38 : vector<8x128xf32>
    %cst_19 = arith.constant 1.000000e+00 : f32
    %40 = vector.broadcast %cst_19 : f32 to vector<8x128xf32>
    %41 = arith.addf %40, %39 : vector<8x128xf32>
    %42 = arith.divf %40, %41 : vector<8x128xf32>
    %43 = math.tanh %37 : vector<8x128xf32>
    %44 = vector.extract_strided_slice %42 {offsets = [0, 0], sizes = [8, 32], strides = [1, 1]} : vector<8x128xf32> to vector<8x32xf32>
    %45 = vector.extract_strided_slice %42 {offsets = [0, 32], sizes = [8, 32], strides = [1, 1]} : vector<8x128xf32> to vector<8x32xf32>
    %46 = vector.extract_strided_slice %43 {offsets = [0, 64], sizes = [8, 32], strides = [1, 1]} : vector<8x128xf32> to vector<8x32xf32>
    %47 = vector.extract_strided_slice %42 {offsets = [0, 96], sizes = [8, 32], strides = [1, 1]} : vector<8x128xf32> to vector<8x32xf32>
    %c0_20 = arith.constant 0 : index
    %c0_21 = arith.constant 0 : index
    %48 = vector.load %arg8[%c0_20, %c0_21] : memref<8x32xf32, #tpu.memory_space<vmem>>, vector<8x32xf32>
    %49 = arith.mulf %45, %48 : vector<8x32xf32>
    %50 = arith.mulf %44, %46 : vector<8x32xf32>
    %51 = arith.addf %49, %50 : vector<8x32xf32>
    %52 = math.tanh %51 : vector<8x32xf32>
    %53 = arith.mulf %47, %52 : vector<8x32xf32>
    %c0_22 = arith.constant 0 : index
    %c0_23 = arith.constant 0 : index
    %54 = vector.load %arg8[%c0_22, %c0_23] : memref<8x32xf32, #tpu.memory_space<vmem>>, vector<8x32xf32>
    tpu.vector_store %arg8[%c0_22, %c0_23], %51 {strides = array<i32>} : memref<8x32xf32, #tpu.memory_space<vmem>>, vector<8x32xf32>,
    %c0_24 = arith.constant 0 : index
    %c0_25 = arith.constant 0 : index
    %55 = vector.load %arg7[%c0_24, %c0_25] : memref<8x32xf32, #tpu.memory_space<vmem>>, vector<8x32xf32>
    tpu.vector_store %arg7[%c0_24, %c0_25], %53 {strides = array<i32>} : memref<8x32xf32, #tpu.memory_space<vmem>>, vector<8x32xf32>,
    %c2_i32 = arith.constant 2 : i32
    %56 = arith.index_cast %c2_i32 : i32 to index
    %c0_26 = arith.constant 0 : index
    %c0_27 = arith.constant 0 : index
    %57 = vector.load %arg2[%56, %c0_26, %c0_27] : memref<4x8x128xbf16, #tpu.memory_space<vmem>>, vector<1x8x128xbf16>
    %58 = vector.shape_cast %57 : vector<1x8x128xbf16> to vector<8x128xbf16>
    %59 = arith.extf %58 : vector<8x128xbf16> to vector<8x128xf32>
    %c0_28 = arith.constant 0 : index
    %c0_29 = arith.constant 0 : index
    %60 = vector.load %arg7[%c0_28, %c0_29] : memref<8x32xf32, #tpu.memory_space<vmem>>, vector<8x32xf32>
    %61 = arith.truncf %60 : vector<8x32xf32> to vector<8x32xbf16>
    %cst_30 = arith.constant dense<0.000000e+00> : vector<8x128xf32>
    %62 = tpu.matmul %61, %3, %cst_30 {dimension_numbers = #tpu.dot_dimension_numbers<[1], [0], [0], [1], [0, 0, 1, 1], [], []>} : vector<8x32xbf16>, vector<32x128xbf16>, vector<8x128xf32> -> vector<8x128xf32>
    %63 = arith.addf %59, %62 : vector<8x128xf32>
    %64 = arith.negf %63 : vector<8x128xf32>
    %65 = math.exp %64 : vector<8x128xf32>
    %cst_31 = arith.constant 1.000000e+00 : f32
    %66 = vector.broadcast %cst_31 : f32 to vector<8x128xf32>
    %67 = arith.addf %66, %65 : vector<8x128xf32>
    %68 = arith.divf %66, %67 : vector<8x128xf32>
    %69 = math.tanh %63 : vector<8x128xf32>
    %70 = vector.extract_strided_slice %68 {offsets = [0, 0], sizes = [8, 32], strides = [1, 1]} : vector<8x128xf32> to vector<8x32xf32>
    %71 = vector.extract_strided_slice %68 {offsets = [0, 32], sizes = [8, 32], strides = [1, 1]} : vector<8x128xf32> to vector<8x32xf32>
    %72 = vector.extract_strided_slice %69 {offsets = [0, 64], sizes = [8, 32], strides = [1, 1]} : vector<8x128xf32> to vector<8x32xf32>
    %73 = vector.extract_strided_slice %68 {offsets = [0, 96], sizes = [8, 32], strides = [1, 1]} : vector<8x128xf32> to vector<8x32xf32>
    %c0_32 = arith.constant 0 : index
    %c0_33 = arith.constant 0 : index
    %74 = vector.load %arg8[%c0_32, %c0_33] : memref<8x32xf32, #tpu.memory_space<vmem>>, vector<8x32xf32>
    %75 = arith.mulf %71, %74 : vector<8x32xf32>
    %76 = arith.mulf %70, %72 : vector<8x32xf32>
    %77 = arith.addf %75, %76 : vector<8x32xf32>
    %78 = math.tanh %77 : vector<8x32xf32>
    %79 = arith.mulf %73, %78 : vector<8x32xf32>
    %c0_34 = arith.constant 0 : index
    %c0_35 = arith.constant 0 : index
    %80 = vector.load %arg8[%c0_34, %c0_35] : memref<8x32xf32, #tpu.memory_space<vmem>>, vector<8x32xf32>
    tpu.vector_store %arg8[%c0_34, %c0_35], %77 {strides = array<i32>} : memref<8x32xf32, #tpu.memory_space<vmem>>, vector<8x32xf32>,
    %c0_36 = arith.constant 0 : index
    %c0_37 = arith.constant 0 : index
    %81 = vector.load %arg7[%c0_36, %c0_37] : memref<8x32xf32, #tpu.memory_space<vmem>>, vector<8x32xf32>
    tpu.vector_store %arg7[%c0_36, %c0_37], %79 {strides = array<i32>} : memref<8x32xf32, #tpu.memory_space<vmem>>, vector<8x32xf32>,
    %c3_i32 = arith.constant 3 : i32
    %82 = arith.index_cast %c3_i32 : i32 to index
    %c0_38 = arith.constant 0 : index
    %c0_39 = arith.constant 0 : index
    %83 = vector.load %arg2[%82, %c0_38, %c0_39] : memref<4x8x128xbf16, #tpu.memory_space<vmem>>, vector<1x8x128xbf16>
    %84 = vector.shape_cast %83 : vector<1x8x128xbf16> to vector<8x128xbf16>
    %85 = arith.extf %84 : vector<8x128xbf16> to vector<8x128xf32>
    %c0_40 = arith.constant 0 : index
    %c0_41 = arith.constant 0 : index
    %86 = vector.load %arg7[%c0_40, %c0_41] : memref<8x32xf32, #tpu.memory_space<vmem>>, vector<8x32xf32>
    %87 = arith.truncf %86 : vector<8x32xf32> to vector<8x32xbf16>
    %cst_42 = arith.constant dense<0.000000e+00> : vector<8x128xf32>
    %88 = tpu.matmul %87, %3, %cst_42 {dimension_numbers = #tpu.dot_dimension_numbers<[1], [0], [0], [1], [0, 0, 1, 1], [], []>} : vector<8x32xbf16>, vector<32x128xbf16>, vector<8x128xf32> -> vector<8x128xf32>
    %89 = arith.addf %85, %88 : vector<8x128xf32>
    %90 = arith.negf %89 : vector<8x128xf32>
    %91 = math.exp %90 : vector<8x128xf32>
    %cst_43 = arith.constant 1.000000e+00 : f32
    %92 = vector.broadcast %cst_43 : f32 to vector<8x128xf32>
    %93 = arith.addf %92, %91 : vector<8x128xf32>
    %94 = arith.divf %92, %93 : vector<8x128xf32>
    %95 = math.tanh %89 : vector<8x128xf32>
    %96 = vector.extract_strided_slice %94 {offsets = [0, 0], sizes = [8, 32], strides = [1, 1]} : vector<8x128xf32> to vector<8x32xf32>
    %97 = vector.extract_strided_slice %94 {offsets = [0, 32], sizes = [8, 32], strides = [1, 1]} : vector<8x128xf32> to vector<8x32xf32>
    %98 = vector.extract_strided_slice %95 {offsets = [0, 64], sizes = [8, 32], strides = [1, 1]} : vector<8x128xf32> to vector<8x32xf32>
    %99 = vector.extract_strided_slice %94 {offsets = [0, 96], sizes = [8, 32], strides = [1, 1]} : vector<8x128xf32> to vector<8x32xf32>
    %c0_44 = arith.constant 0 : index
    %c0_45 = arith.constant 0 : index
    %100 = vector.load %arg8[%c0_44, %c0_45] : memref<8x32xf32, #tpu.memory_space<vmem>>, vector<8x32xf32>
    %101 = arith.mulf %97, %100 : vector<8x32xf32>
    %102 = arith.mulf %96, %98 : vector<8x32xf32>
    %103 = arith.addf %101, %102 : vector<8x32xf32>
    %104 = math.tanh %103 : vector<8x32xf32>
    %105 = arith.mulf %99, %104 : vector<8x32xf32>
    %c0_46 = arith.constant 0 : index
    %c0_47 = arith.constant 0 : index
    %106 = vector.load %arg8[%c0_46, %c0_47] : memref<8x32xf32, #tpu.memory_space<vmem>>, vector<8x32xf32>
    tpu.vector_store %arg8[%c0_46, %c0_47], %103 {strides = array<i32>} : memref<8x32xf32, #tpu.memory_space<vmem>>, vector<8x32xf32>,
    %c0_48 = arith.constant 0 : index
    %c0_49 = arith.constant 0 : index
    %107 = vector.load %arg7[%c0_48, %c0_49] : memref<8x32xf32, #tpu.memory_space<vmem>>, vector<8x32xf32>
    tpu.vector_store %arg7[%c0_48, %c0_49], %105 {strides = array<i32>} : memref<8x32xf32, #tpu.memory_space<vmem>>, vector<8x32xf32>,
    %c4_i32 = arith.constant 4 : i32
    %c1_i32_50 = arith.constant 1 : i32
    %108 = arith.cmpi eq, %arg1, %c1_i32_50 : i32
    %109 = arith.extui %108 : i1 to i32
    %c0_i32_51 = arith.constant 0 : i32
    %110 = arith.cmpi ne, %109, %c0_i32_51 : i32
    scf.if %110 {
      %c0_52 = arith.constant 0 : index
      %c0_53 = arith.constant 0 : index
      %111 = vector.load %arg7[%c0_52, %c0_53] : memref<8x32xf32, #tpu.memory_space<vmem>>, vector<8x32xf32>
      %112 = arith.truncf %111 : vector<8x32xf32> to vector<8x32xbf16>
      %c0_54 = arith.constant 0 : index
      %c0_55 = arith.constant 0 : index
      %113 = vector.load %arg4[%c0_54, %c0_55] : memref<32x128xbf16, #tpu.memory_space<vmem>>, vector<32x128xbf16>
      %cst_56 = arith.constant dense<0.000000e+00> : vector<8x128xf32>
      %114 = tpu.matmul %112, %113, %cst_56 {dimension_numbers = #tpu.dot_dimension_numbers<[1], [0], [0], [1], [0, 0, 1, 1], [], []>} : vector<8x32xbf16>, vector<32x128xbf16>, vector<8x128xf32> -> vector<8x128xf32>
      %c0_57 = arith.constant 0 : index
      %c0_58 = arith.constant 0 : index
      %115 = vector.load %arg5[%c0_57, %c0_58] : memref<1x128xf32, #tpu.memory_space<vmem>>, vector<1x128xf32>
      %116 = vector.broadcast %115 : vector<1x128xf32> to vector<8x128xf32>
      %117 = arith.addf %114, %116 : vector<8x128xf32>
      %c0_59 = arith.constant 0 : index
      %c0_60 = arith.constant 0 : index
      %118 = vector.load %arg6[%c0_59, %c0_60] : memref<8x128xf32, #tpu.memory_space<vmem>>, vector<8x128xf32>
      tpu.vector_store %arg6[%c0_59, %c0_60], %117 {strides = array<i32>} : memref<8x128xf32, #tpu.memory_space<vmem>>, vector<8x128xf32>,
    } else {
    }
    return
  }
  func.func @transform_0(%arg0: i32, %arg1: i32) -> (i32, i32, i32) {
    %c0_i32 = arith.constant 0 : i32
    %c0_i32_0 = arith.constant 0 : i32
    return %arg1, %arg0, %c0_i32 : i32, i32, i32
  }
  func.func @transform_1(%arg0: i32, %arg1: i32) -> (i32, i32) {
    %c0_i32 = arith.constant 0 : i32
    %c0_i32_0 = arith.constant 0 : i32
    %c0_i32_1 = arith.constant 0 : i32
    return %c0_i32, %c0_i32_0 : i32, i32
  }
  func.func @transform_2(%arg0: i32, %arg1: i32) -> (i32, i32) {
    %c0_i32 = arith.constant 0 : i32
    %c0_i32_0 = arith.constant 0 : i32
    %c0_i32_1 = arith.constant 0 : i32
    return %c0_i32, %c0_i32_0 : i32, i32
  }
  func.func @transform_3(%arg0: i32, %arg1: i32) -> (i32, i32) {
    %c0_i32 = arith.constant 0 : i32
    %c0_i32_0 = arith.constant 0 : i32
    %c0_i32_1 = arith.constant 0 : i32
    return %c0_i32, %c0_i32_0 : i32, i32
  }
  func.func @transform_4(%arg0: i32, %arg1: i32) -> (i32, i32) {
    %c0_i32 = arith.constant 0 : i32
    %c0_i32_0 = arith.constant 0 : i32
    return %arg0, %c0_i32 : i32, i32
  }
}

</mosaic_0001>

<llo_original>
// kernel: tpu_custom_call.1
$region0: #{tpu_custom_call.1}
  #allocation0 [shape = 'u32[]', space=smem, size = 0x4, offset = 0x4, fixed_abs, tag = 'smem constant byte address 0x4 - core index']
  #allocation1 [shape = 'u32[144,128]{1,0:T(1,128)}', space=vmem, size = 0x12000, scoped, tag = 'internal scratch']
  #allocation2 [shape = 'f32[8,32]{1,0:T(8,128)}', space=vmem, size = 0x1000, scoped, tag = 'scratch operand']
  #allocation3 [shape = 'f32[8,32]{1,0:T(8,128)}', space=vmem, size = 0x1000, scoped, tag = 'scratch operand']
  %s0 = inlined_call_operand.hbm [shape: bf16[8,8,128], index: 0, kind: input, shape index: {}]
  %s1 = inlined_call_operand.hbm [shape: bf16[32,128], index: 1, kind: input, shape index: {}]
  %s2 = inlined_call_operand.hbm [shape: bf16[32,128], index: 2, kind: input, shape index: {}]
  %s3 = inlined_call_operand.vmem [shape: f32[1,128], index: 3, kind: input, shape index: {}]
  %s4 = inlined_call_operand.hbm [shape: f32[8,128], index: 4, kind: output, shape index: {}]
  %s5 = sld [smem:[#allocation0]]
  $region69: #{tpu_custom_call.1} parent=0
    _
  %s7 = ssub.s32 1, %s5
  %s8 = scalar_select 0, %s7, %s5
  $region1: #{tpu_custom_call.1} parent=0
    #allocation4 [shape = 'u8[16384]{0}', space=vmem, size = 0x4000, scoped, tag = 'input window, operand 0']
    #allocation5 [shape = 's32[2]{0}', space=sflag, size = 0x8, scoped, tag = 'scoped memory for tpu_custom_call.1']
    #allocation6 [shape = 's32[2]{0}', space=sflag, size = 0x8, scoped, tag = 'scoped memory for tpu_custom_call.1']
    #allocation7 [shape = 'u8[8192]{0}', space=vmem, size = 0x2000, scoped, tag = 'input window, operand 1, single buffered']
    #allocation8 [shape = 's32[1]{0}', space=sflag, size = 0x4, scoped, tag = 'scoped memory for tpu_custom_call.1']
    #allocation9 [shape = 'u8[8192]{0}', space=vmem, size = 0x2000, scoped, tag = 'input window, operand 2, single buffered']
    #allocation10 [shape = 'u8[4096]{0}', space=vmem, size = 0x1000, scoped, tag = 'output window, operand 0, single buffered']
    %9 = vsyncpa [#allocation5], 0
    %s10 = scalar_lea.sflag [#allocation5], 1
    %11 = vsyncpa %s10, 0
    %12 = vsyncpa [#allocation8], 0
    %13 = vsyncpa [#allocation6], 0
    loop: start=0, step=1, limit=4
    $region2: #{tpu_custom_call.1} parent=1 // loop_pre_header
      _
    $region3: #{tpu_custom_call.1} parent=1 // loop_header
      %s15 = sphi 0, %s19
      %p16 = scmp.ge.s32.totalorder %s15, 4
      %s22 = sphi 0, %s34
      %s23 = sphi 0, %s30
      %s24 = sphi 0, %s22
      %s25 = sphi 0, %s23
      %s26 = sphi 0, %s24
      %s27 = sphi 0, %s25
      %s39 = sphi 0, %s41
      %s42 = sphi 0, %s39
      %s43 = sphi 0, %s42
      %s59 = sphi 0, %s43
      %s63 = sphi 0, %s63
      %s65 = sphi 0, %s63
      %s66 = sphi 0, %s65
      %s80 = sphi 0, %s66
      %s84 = sphi 0, %s84
      %s86 = sphi 0, %s84
      %s87 = sphi 0, %s86
      %s101 = sphi 0, %s87
      %s105 = sphi 0, %s105
      %s107 = sphi 0, %s105
      %s108 = sphi 0, %s107
      %s122 = sphi 0, %s108
      %s128 = sphi 0, %s130
      %s131 = sphi 0, %s128
      %s132 = sphi 0, %s131
      %s148 = sphi 0, %s132
    $region4: #{tpu_custom_call.1} parent=1 // loop_header_branch
      %18 = sbr.rel (%p16) target = $region8
    $region5: #{tpu_custom_call.1} parent=1 // loop_body
      %s20 = ssub.s32 %s15, 1
      %s21 = ssub.s32 %s15, 2
      %s28 = sadd.s32 1, %s23
      %p29 = scmp.ge.s32.totalorder %s28, 2
      %s30 = scalar_select %p29, 0, %s28
      %s31 = sadd.s32 1, %s22
      %s32 = scalar_select %p29, %s31, %s22
      %p33 = scmp.ge.s32.totalorder %s32, 1
      %s34 = scalar_select %p33, 0, %s32
      %s35 = ssub.s32 %s23, %s30
      %s36 = ssub.s32 %s22, %s34
      %s37 = sor.u32 %s35, %s36
      %p38 = scmp.eq.s32.totalorder %s37, 0
      %s40 = sadd.s32 %s39, 1
      %s41 = scalar_select %p38, %s39, %s40
      %p44 = pneg %p38
      %p45 = scmp.eq.s32.totalorder %s15, 1
      %p46 = por %p44, %p45
      %p47 = scmp.ne.s32.totalorder %s39, %s42
      %p48 = scmp.eq.s32.totalorder %s15, 0
      %p49 = por %p47, %p48
      %p50 = scmp.ne.s32.totalorder %s39, %s42
      %p51 = scmp.eq.s32.totalorder %s20, 1
      %p52 = por %p50, %p51
      %p53 = scmp.ne.s32.totalorder %s42, %s43
      %p54 = scmp.eq.s32.totalorder %s20, 0
      %p55 = por %p53, %p54
      %p56 = scmp.ne.s32.totalorder %s42, %s43
      %p57 = scmp.eq.s32.totalorder %s21, 1
      %p58 = por %p56, %p57
      %p60 = scmp.ne.s32.totalorder %s43, %s59
      %p61 = scmp.eq.s32.totalorder %s21, 0
      %p62 = por %p60, %p61
      %s64 = sadd.s32 %s63, 1
      %p67 = scmp.eq.s32.totalorder %s15, 1
      %p68 = scmp.ne.s32.totalorder %s63, %s65
      %p69 = scmp.eq.s32.totalorder %s15, 0
      %p70 = por %p68, %p69
      %p71 = scmp.ne.s32.totalorder %s63, %s65
      %p72 = scmp.eq.s32.totalorder %s20, 1
      %p73 = por %p71, %p72
      %p74 = scmp.ne.s32.totalorder %s65, %s66
      %p75 = scmp.eq.s32.totalorder %s20, 0
      %p76 = por %p74, %p75
      %p77 = scmp.ne.s32.totalorder %s65, %s66
      %p78 = scmp.eq.s32.totalorder %s21, 1
      %p79 = por %p77, %p78
      %p81 = scmp.ne.s32.totalorder %s66, %s80
      %p82 = scmp.eq.s32.totalorder %s21, 0
      %p83 = por %p81, %p82
      %s85 = sadd.s32 %s84, 1
      %p88 = scmp.eq.s32.totalorder %s15, 1
      %p89 = scmp.ne.s32.totalorder %s84, %s86
      %p90 = scmp.eq.s32.totalorder %s15, 0
      %p91 = por %p89, %p90
      %p92 = scmp.ne.s32.totalorder %s84, %s86
      %p93 = scmp.eq.s32.totalorder %s20, 1
      %p94 = por %p92, %p93
      %p95 = scmp.ne.s32.totalorder %s86, %s87
      %p96 = scmp.eq.s32.totalorder %s20, 0
      %p97 = por %p95, %p96
      %p98 = scmp.ne.s32.totalorder %s86, %s87
      %p99 = scmp.eq.s32.totalorder %s21, 1
      %p100 = por %p98, %p99
      %p102 = scmp.ne.s32.totalorder %s87, %s101
      %p103 = scmp.eq.s32.totalorder %s21, 0
      %p104 = por %p102, %p103
      %s106 = sadd.s32 %s105, 1
      %p109 = scmp.eq.s32.totalorder %s15, 1
      %p110 = scmp.ne.s32.totalorder %s105, %s107
      %p111 = scmp.eq.s32.totalorder %s15, 0
      %p112 = por %p110, %p111
      %p113 = scmp.ne.s32.totalorder %s105, %s107
      %p114 = scmp.eq.s32.totalorder %s20, 1
      %p115 = por %p113, %p114
      %p116 = scmp.ne.s32.totalorder %s107, %s108
      %p117 = scmp.eq.s32.totalorder %s20, 0
      %p118 = por %p116, %p117
      %p119 = scmp.ne.s32.totalorder %s107, %s108
      %p120 = scmp.eq.s32.totalorder %s21, 1
      %p121 = por %p119, %p120
      %p123 = scmp.ne.s32.totalorder %s108, %s122
      %p124 = scmp.eq.s32.totalorder %s21, 0
      %p125 = por %p123, %p124
      %s126 = ssub.s32 %s22, %s34
      %p127 = scmp.eq.s32.totalorder %s126, 0
      %s129 = sadd.s32 %s128, 1
      %s130 = scalar_select %p127, %s128, %s129
      %p133 = pneg %p127
      %p134 = scmp.eq.s32.totalorder %s15, 1
      %p135 = por %p133, %p134
      %p136 = scmp.ne.s32.totalorder %s128, %s131
      %p137 = scmp.eq.s32.totalorder %s15, 0
      %p138 = por %p136, %p137
      %p139 = scmp.ne.s32.totalorder %s128, %s131
      %p140 = scmp.eq.s32.totalorder %s20, 1
      %p141 = por %p139, %p140
      %p142 = scmp.ne.s32.totalorder %s131, %s132
      %p143 = scmp.eq.s32.totalorder %s20, 0
      %p144 = por %p142, %p143
      %p145 = scmp.ne.s32.totalorder %s131, %s132
      %p146 = scmp.eq.s32.totalorder %s21, 1
      %p147 = por %p145, %p146
      %p149 = scmp.ne.s32.totalorder %s132, %s148
      %p150 = scmp.eq.s32.totalorder %s21, 0
      %p151 = por %p149, %p150
      %p152 = scmp.le.s32.totalorder 1, %s15
      %p153 = scmp.lt.s32.totalorder %s15, 3
      %p154 = pnand %p152, %p153
      %p155 = pneg %p154
      // Predicated region
      $region9: #{tpu_custom_call.1} parent=5 // pred_check
        _
      $region10: #{tpu_custom_call.1} parent=5 // pred_check_branch
        %157 = sbr.rel (%p154) target = $region12
      $region11: #{tpu_custom_call.1} parent=5 // pred_region
        %s158 = ssub.s32 %s15, 1
        // Predicated region
        $region13: #{tpu_custom_call.1} parent=11 // pred_check
          %p159 = pneg %p76
        $region14: #{tpu_custom_call.1} parent=11 // pred_check_branch
          %161 = sbr.rel (%p159) target = $region16
        $region15: #{tpu_custom_call.1} parent=11 // pred_region
          %s163 = ssub.s32 256, 256
          %164 = vsyncadd [#allocation8], %s163
          %s165 = sshll.u32 [#allocation7], 4
          %s166 = int_to_ptr.vmem [resolvable:$true] %s165
          %171 = dma.hbm_to_vmem [thread:$0]  %s1, 256, %s166, [#allocation8], 64, 64, 4
        $region16: #{tpu_custom_call.1} parent=11 // pred_fallthru
          _
        // Predicated region
        $region17: #{tpu_custom_call.1} parent=11 // pred_check
          %p172 = pneg %p97
        $region18: #{tpu_custom_call.1} parent=11 // pred_check_branch
          %174 = sbr.rel (%p172) target = $region20
        $region19: #{tpu_custom_call.1} parent=11 // pred_region
          %s176 = ssub.s32 256, 256
          %177 = vsyncadd [#allocation8], %s176
          %s178 = sshll.u32 [#allocation9], 4
          %s179 = int_to_ptr.vmem [resolvable:$true] %s178
          %184 = dma.hbm_to_vmem [thread:$0]  %s2, 256, %s179, [#allocation8], 64, 64, 4
        $region20: #{tpu_custom_call.1} parent=11 // pred_fallthru
          _
        // Predicated region
        $region21: #{tpu_custom_call.1} parent=11 // pred_check
          %p185 = pneg %p118
        $region22: #{tpu_custom_call.1} parent=11 // pred_check_branch
          %187 = sbr.rel (%p185) target = $region24
        $region23: #{tpu_custom_call.1} parent=11 // pred_region
          _
        $region24: #{tpu_custom_call.1} parent=11 // pred_fallthru
          _
      $region12: #{tpu_custom_call.1} parent=5 // pred_fallthru
        _
      %p188 = scmp.lt.s32.totalorder %s15, 2
      // Predicated region
      $region25: #{tpu_custom_call.1} parent=5 // pred_check
        %p189 = pneg %p188
      $region26: #{tpu_custom_call.1} parent=5 // pred_check_branch
        %191 = sbr.rel (%p189) target = $region28
      $region27: #{tpu_custom_call.1} parent=5 // pred_region
        // Predicated region
        $region29: #{tpu_custom_call.1} parent=27 // pred_check
          %p192 = pneg %p49
        $region30: #{tpu_custom_call.1} parent=27 // pred_check_branch
          %194 = sbr.rel (%p192) target = $region32
        $region31: #{tpu_custom_call.1} parent=27 // pred_region
          %s195 = sand.u32 %s39, 1
          %s196 = scalar_lea.sflag [#allocation5], %s195
          %s197 = sand.u32 %s39, 1
          %s198 = smul.addr %s197, 16
          %s199 = scalar_lea.vmem [#allocation4], %s198
          %s200 = smul.u32 4, %s23
          %s202 = ssub.s32 256, 256
          %203 = vsyncadd %s196, %s202
          %s204 = sadd.s32 %s22, %s200
          %s205 = smul.addr %s204, 64
          %s206 = scalar_lea.hbm %s0, %s205
          %s207 = sshll.u32 %s199, 4
          %s208 = int_to_ptr.vmem [resolvable:$true] %s207
          %213 = dma.hbm_to_vmem [thread:$0]  %s206, 256, %s208, %s196, 64, 64, 4
        $region32: #{tpu_custom_call.1} parent=27 // pred_fallthru
          _
      $region28: #{tpu_custom_call.1} parent=5 // pred_fallthru
        _
      %p214 = scmp.le.s32.totalorder 1, %s15
      %p215 = scmp.lt.s32.totalorder %s15, 3
      %p216 = pnand %p214, %p215
      %p217 = pneg %p216
      // Predicated region
      $region33: #{tpu_custom_call.1} parent=5 // pred_check
        _
      $region34: #{tpu_custom_call.1} parent=5 // pred_check_branch
        %219 = sbr.rel (%p216) target = $region36
      $region35: #{tpu_custom_call.1} parent=5 // pred_region
        %s220 = ssub.s32 %s15, 1
        %s221 = sand.u32 %s42, 1
        %s222 = scalar_lea.sflag [#allocation5], %s221
        %s223 = sand.u32 %s42, 1
        %s224 = smul.addr %s223, 16
        %s225 = scalar_lea.vmem [#allocation4], %s224
        // Predicated region
        $region37: #{tpu_custom_call.1} parent=35 // pred_check
          %p226 = pneg %p55
        $region38: #{tpu_custom_call.1} parent=35 // pred_check_branch
          %228 = sbr.rel (%p226) target = $region40
        $region39: #{tpu_custom_call.1} parent=35 // pred_region
          %229 = dma.done %s222, 256
        $region40: #{tpu_custom_call.1} parent=35 // pred_fallthru
          _
        // Predicated region
        $region41: #{tpu_custom_call.1} parent=35 // pred_check
          %p230 = pneg %p76
        $region42: #{tpu_custom_call.1} parent=35 // pred_check_branch
          %232 = sbr.rel (%p230) target = $region44
        $region43: #{tpu_custom_call.1} parent=35 // pred_region
          %233 = dma.done [#allocation8], 256
        $region44: #{tpu_custom_call.1} parent=35 // pred_fallthru
          _
        // Predicated region
        $region45: #{tpu_custom_call.1} parent=35 // pred_check
          %p234 = pneg %p97
        $region46: #{tpu_custom_call.1} parent=35 // pred_check_branch
          %236 = sbr.rel (%p234) target = $region48
        $region47: #{tpu_custom_call.1} parent=35 // pred_region
          %237 = dma.done [#allocation8], 256
        $region48: #{tpu_custom_call.1} parent=35 // pred_fallthru
          _
        %s238 = sand.u32 %s42, 1
        %s239 = scalar_lea.sflag [#allocation5], %s238
        %s240 = sand.u32 %s42, 1
        %s241 = smul.addr %s240, 16
        %s242 = scalar_lea.vmem [#allocation4], %s241
        %p243 = pneg %p55
        %p244 = pneg %p52
        %p245 = pneg %p76
        %p246 = pneg %p73
        %p247 = pneg %p97
        %p248 = pneg %p94
        %p249 = pneg %p118
        %p250 = pneg %p115
        %p251 = pneg %p144
        %p252 = pneg %p141
        %s253 = smul.u32 4, %s25
        %p255 = scmp.eq.s32.totalorder %s25, 0
        // Predicated region
        $region49: #{tpu_custom_call.1} parent=35 // pred_check
          %p256 = pneg %p255
        $region50: #{tpu_custom_call.1} parent=35 // pred_check_branch
          %258 = sbr.rel (%p256) target = $region52
        $region51: #{tpu_custom_call.1} parent=35 // pred_region
          %vm259 = vcmask 261120
          %260 = vst.msk [vmem:[#allocation2] sm:$0xff] %vm259, 0.0
          %261 = vst.msk [vmem:[#allocation3] sm:$0xff] %vm259, 0.0
        $region52: #{tpu_custom_call.1} parent=35 // pred_fallthru
          _
        %v262 = vld [vmem:[#allocation7] sm:$0xf]
        %v263 = vld [vmem:[#allocation7 + $0x4] sm:$0xf]
        %v264 = vld [vmem:[#allocation7 + $0x8] sm:$0xf]
        %v265 = vld [vmem:[#allocation7 + $0xc] sm:$0xf]
        %v266 = vld [vmem:[%s225] sm:$0xf]
        %v267 = vunpack.c.l.bf16 %v266
        %v268 = vld [vmem:[#allocation2] sm:$0xff]
        %v269 = vpack.c.bf16 %v268, %v268
        %v274 = vunpack.c.l.b16 %v262
        %v275 = vunpack.c.l.b16 %v263
        %v276 = vunpack.c.l.b16 %v264
        %v277 = vunpack.c.l.b16 %v265
        %v278 = vpack.c.b16 %v275, %v274
        %v279 = vpack.c.b16 %v277, %v276
        %vm282 = vcmask 261120
        %v284 = vsel %vm282, %v269, 0
        %286 = vmatprep.subr.bf16.mxu0 0
        %287 = vmatpush1.bf16.msra.mxu0 0
        %288 = vmatprep.subr.bf16.mxu0 0
        %289 = vmatpush1.bf16.msra.mxu0 0
        %290 = vmatprep.subr.bf16.mxu0 0
        %291 = vmatpush1.bf16.msra.mxu0 0
        %292 = vmatprep.subr.bf16.mxu0 0
        %293 = vmatpush1.bf16.msra.mxu0 0
        %294 = vmatprep.subr.bf16.mxu0 0
        %295 = vmatpush1.bf16.msra.mxu0 0
        %296 = vmatprep.subr.bf16.mxu0 0
        %297 = vmatpush1.bf16.msra.mxu0 0
        %298 = vmatprep.subr.bf16.mxu0 0
        %299 = vmatpush1.bf16.msra.mxu0 %v279
        %300 = vmatprep.subr.bf16.mxu0 0
        %301 = vmatpush1.bf16.msra.mxu0 %v278
        %302 = vmatprep.subr.bf16.mxu0 0
        %303 = vmatpush2.bf16.msra.mxu0 0
        %304 = vmatprep.subr.bf16.mxu0 0
        %305 = vmatpush2.bf16.msra.mxu0 0
        %306 = vmatprep.subr.bf16.mxu0 0
        %307 = vmatpush2.bf16.msra.mxu0 0
        %308 = vmatprep.subr.bf16.mxu0 0
        %309 = vmatpush2.bf16.msra.mxu0 0
        %310 = vmatprep.subr.bf16.mxu0 0
        %311 = vmatpush2.bf16.msra.mxu0 0
        %312 = vmatprep.subr.bf16.mxu0 0
        %313 = vmatpush2.bf16.msra.mxu0 0
        %314 = vmatprep.subr.bf16.mxu0 0
        %315 = vmatpush2.bf16.msra.mxu0 0
        %316 = vmatprep.subr.bf16.mxu0 0
        %317 = vmatpush2.bf16.msra.mxu0 0
        %318 = vmatprep.mubr.bf16.mxu0 0
        %319 = vmatmul.mubr.bf16.gmra.mxu0 %v284
        %v320 = vpop.f32.mrf.mxu0
        %v321 = vadd.f32 0.0, %v320
        %v322 = vpop.f32.mrf.mxu0
        %v323 = vpop.f32.mrf.mxu0
        %v324 = vpop.f32.mrf.mxu0
        %325 = vdwg.mxu0
        %v326 = vadd.f32 %v267, %v321
        %v327 = vxor.u32 %v326, 2147483648
        %v328 = vmul.f32 %v327, 1.442695
        %v329 = vpow.pop %v328
        %v330 = vadd.f32 %v329, 1.0
        %v331 = vrcp.pop %v330
        %v332 = vmul.f32 1.0, %v331
        %v333 = vtanh.pop %v326
        %v334 = vld [vmem:[#allocation3] sm:$0xff]
        %336 = vrot.lane.b32.xlu0 %v334, 32
        %v337 = vpop.permute.xlu0 %336
        %v339 = vmul.f32 %v332, %v337
        %341 = vrot.lane.b32.xlu0 %v333, 64
        %v342 = vpop.permute.xlu0 %341
        %v344 = vmul.f32 %v332, %v342
        %346 = vrot.lane.b32.xlu0 %v344, 32
        %v347 = vpop.permute.xlu0 %346
        %v349 = vadd.f32 %v339, %v347
        %v350 = vtanh.pop %v349
        %352 = vrot.lane.b32.xlu0 %v350, 64
        %v353 = vpop.permute.xlu0 %352
        %v355 = vmul.f32 %v332, %v353
        %357 = vrot.lane.b32.xlu0 %v349, 96
        %v358 = vpop.permute.xlu0 %357
        %360 = vst.msk [vmem:[#allocation3] sm:$0xff] %vm282, %v358
        %362 = vrot.lane.b32.xlu0 %v355, 32
        %v363 = vpop.permute.xlu0 %362
        %365 = vst.msk [vmem:[#allocation2] sm:$0xff] %vm282, %v363
        %s366 = scalar_lea.vmem %s225, 4 [#allocation4]
        %v367 = vld [vmem:[%s366] sm:$0xf]
        %v368 = vunpack.c.l.bf16 %v367
        %v369 = vld [vmem:[#allocation2] sm:$0xff]
        %v370 = vpack.c.bf16 %v369, %v369
        %v372 = vsel %vm282, %v370, 0
        %374 = vmatprep.subr.bf16.mxu0 0
        %375 = vmatpush1.bf16.msra.mxu0 0
        %376 = vmatprep.subr.bf16.mxu0 0
        %377 = vmatpush1.bf16.msra.mxu0 0
        %378 = vmatprep.subr.bf16.mxu0 0
        %379 = vmatpush1.bf16.msra.mxu0 0
        %380 = vmatprep.subr.bf16.mxu0 0
        %381 = vmatpush1.bf16.msra.mxu0 0
        %382 = vmatprep.subr.bf16.mxu0 0
        %383 = vmatpush1.bf16.msra.mxu0 0
        %384 = vmatprep.subr.bf16.mxu0 0
        %385 = vmatpush1.bf16.msra.mxu0 0
        %386 = vmatprep.subr.bf16.mxu0 0
        %387 = vmatpush1.bf16.msra.mxu0 %v279
        %388 = vmatprep.subr.bf16.mxu0 0
        %389 = vmatpush1.bf16.msra.mxu0 %v278
        %390 = vmatprep.subr.bf16.mxu0 0
        %391 = vmatpush2.bf16.msra.mxu0 0
        %392 = vmatprep.subr.bf16.mxu0 0
        %393 = vmatpush2.bf16.msra.mxu0 0
        %394 = vmatprep.subr.bf16.mxu0 0
        %395 = vmatpush2.bf16.msra.mxu0 0
        %396 = vmatprep.subr.bf16.mxu0 0
        %397 = vmatpush2.bf16.msra.mxu0 0
        %398 = vmatprep.subr.bf16.mxu0 0
        %399 = vmatpush2.bf16.msra.mxu0 0
        %400 = vmatprep.subr.bf16.mxu0 0
        %401 = vmatpush2.bf16.msra.mxu0 0
        %402 = vmatprep.subr.bf16.mxu0 0
        %403 = vmatpush2.bf16.msra.mxu0 0
        %404 = vmatprep.subr.bf16.mxu0 0
        %405 = vmatpush2.bf16.msra.mxu0 0
        %406 = vmatprep.mubr.bf16.mxu0 0
        %407 = vmatmul.mubr.bf16.gmra.mxu0 %v372
        %v408 = vpop.f32.mrf.mxu0
        %v409 = vadd.f32 0.0, %v408
        %v410 = vpop.f32.mrf.mxu0
        %v411 = vpop.f32.mrf.mxu0
        %v412 = vpop.f32.mrf.mxu0
        %413 = vdwg.mxu0
        %v414 = vadd.f32 %v368, %v409
        %v415 = vxor.u32 %v414, 2147483648
        %v416 = vmul.f32 %v415, 1.442695
        %v417 = vpow.pop %v416
        %v418 = vadd.f32 %v417, 1.0
        %v419 = vrcp.pop %v418
        %v420 = vmul.f32 1.0, %v419
        %v421 = vtanh.pop %v414
        %v422 = vld [vmem:[#allocation3] sm:$0xff]
        %424 = vrot.lane.b32.xlu0 %v422, 32
        %v425 = vpop.permute.xlu0 %424
        %v427 = vmul.f32 %v420, %v425
        %429 = vrot.lane.b32.xlu0 %v421, 64
        %v430 = vpop.permute.xlu0 %429
        %v432 = vmul.f32 %v420, %v430
        %434 = vrot.lane.b32.xlu0 %v432, 32
        %v435 = vpop.permute.xlu0 %434
        %v437 = vadd.f32 %v427, %v435
        %v438 = vtanh.pop %v437
        %440 = vrot.lane.b32.xlu0 %v438, 64
        %v441 = vpop.permute.xlu0 %440
        %v443 = vmul.f32 %v420, %v441
        %445 = vrot.lane.b32.xlu0 %v437, 96
        %v446 = vpop.permute.xlu0 %445
        %448 = vst.msk [vmem:[#allocation3] sm:$0xff] %vm282, %v446
        %450 = vrot.lane.b32.xlu0 %v443, 32
        %v451 = vpop.permute.xlu0 %450
        %453 = vst.msk [vmem:[#allocation2] sm:$0xff] %vm282, %v451
        %s454 = scalar_lea.vmem %s225, 8 [#allocation4]
        %v455 = vld [vmem:[%s454] sm:$0xf]
        %v456 = vunpack.c.l.bf16 %v455
        %v457 = vld [vmem:[#allocation2] sm:$0xff]
        %v458 = vpack.c.bf16 %v457, %v457
        %v460 = vsel %vm282, %v458, 0
        %462 = vmatprep.subr.bf16.mxu0 0
        %463 = vmatpush1.bf16.msra.mxu0 0
        %464 = vmatprep.subr.bf16.mxu0 0
        %465 = vmatpush1.bf16.msra.mxu0 0
        %466 = vmatprep.subr.bf16.mxu0 0
        %467 = vmatpush1.bf16.msra.mxu0 0
        %468 = vmatprep.subr.bf16.mxu0 0
        %469 = vmatpush1.bf16.msra.mxu0 0
        %470 = vmatprep.subr.bf16.mxu0 0
        %471 = vmatpush1.bf16.msra.mxu0 0
        %472 = vmatprep.subr.bf16.mxu0 0
        %473 = vmatpush1.bf16.msra.mxu0 0
        %474 = vmatprep.subr.bf16.mxu0 0
        %475 = vmatpush1.bf16.msra.mxu0 %v279
        %476 = vmatprep.subr.bf16.mxu0 0
        %477 = vmatpush1.bf16.msra.mxu0 %v278
        %478 = vmatprep.subr.bf16.mxu0 0
        %479 = vmatpush2.bf16.msra.mxu0 0
        %480 = vmatprep.subr.bf16.mxu0 0
        %481 = vmatpush2.bf16.msra.mxu0 0
        %482 = vmatprep.subr.bf16.mxu0 0
        %483 = vmatpush2.bf16.msra.mxu0 0
        %484 = vmatprep.subr.bf16.mxu0 0
        %485 = vmatpush2.bf16.msra.mxu0 0
        %486 = vmatprep.subr.bf16.mxu0 0
        %487 = vmatpush2.bf16.msra.mxu0 0
        %488 = vmatprep.subr.bf16.mxu0 0
        %489 = vmatpush2.bf16.msra.mxu0 0
        %490 = vmatprep.subr.bf16.mxu0 0
        %491 = vmatpush2.bf16.msra.mxu0 0
        %492 = vmatprep.subr.bf16.mxu0 0
        %493 = vmatpush2.bf16.msra.mxu0 0
        %494 = vmatprep.mubr.bf16.mxu0 0
        %495 = vmatmul.mubr.bf16.gmra.mxu0 %v460
        %v496 = vpop.f32.mrf.mxu0
        %v497 = vadd.f32 0.0, %v496
        %v498 = vpop.f32.mrf.mxu0
        %v499 = vpop.f32.mrf.mxu0
        %v500 = vpop.f32.mrf.mxu0
        %501 = vdwg.mxu0
        %v502 = vadd.f32 %v456, %v497
        %v503 = vxor.u32 %v502, 2147483648
        %v504 = vmul.f32 %v503, 1.442695
        %v505 = vpow.pop %v504
        %v506 = vadd.f32 %v505, 1.0
        %v507 = vrcp.pop %v506
        %v508 = vmul.f32 1.0, %v507
        %v509 = vtanh.pop %v502
        %v510 = vld [vmem:[#allocation3] sm:$0xff]
        %512 = vrot.lane.b32.xlu0 %v510, 32
        %v513 = vpop.permute.xlu0 %512
        %v515 = vmul.f32 %v508, %v513
        %517 = vrot.lane.b32.xlu0 %v509, 64
        %v518 = vpop.permute.xlu0 %517
        %v520 = vmul.f32 %v508, %v518
        %522 = vrot.lane.b32.xlu0 %v520, 32
        %v523 = vpop.permute.xlu0 %522
        %v525 = vadd.f32 %v515, %v523
        %v526 = vtanh.pop %v525
        %528 = vrot.lane.b32.xlu0 %v526, 64
        %v529 = vpop.permute.xlu0 %528
        %v531 = vmul.f32 %v508, %v529
        %533 = vrot.lane.b32.xlu0 %v525, 96
        %v534 = vpop.permute.xlu0 %533
        %536 = vst.msk [vmem:[#allocation3] sm:$0xff] %vm282, %v534
        %538 = vrot.lane.b32.xlu0 %v531, 32
        %v539 = vpop.permute.xlu0 %538
        %541 = vst.msk [vmem:[#allocation2] sm:$0xff] %vm282, %v539
        %s542 = scalar_lea.vmem %s225, 12 [#allocation4]
        %v543 = vld [vmem:[%s542] sm:$0xf]
        %v544 = vunpack.c.l.bf16 %v543
        %v545 = vld [vmem:[#allocation2] sm:$0xff]
        %v546 = vpack.c.bf16 %v545, %v545
        %v548 = vsel %vm282, %v546, 0
        %550 = vmatprep.subr.bf16.mxu0 0
        %551 = vmatpush1.bf16.msra.mxu0 0
        %552 = vmatprep.subr.bf16.mxu0 0
        %553 = vmatpush1.bf16.msra.mxu0 0
        %554 = vmatprep.subr.bf16.mxu0 0
        %555 = vmatpush1.bf16.msra.mxu0 0
        %556 = vmatprep.subr.bf16.mxu0 0
        %557 = vmatpush1.bf16.msra.mxu0 0
        %558 = vmatprep.subr.bf16.mxu0 0
        %559 = vmatpush1.bf16.msra.mxu0 0
        %560 = vmatprep.subr.bf16.mxu0 0
        %561 = vmatpush1.bf16.msra.mxu0 0
        %562 = vmatprep.subr.bf16.mxu0 0
        %563 = vmatpush1.bf16.msra.mxu0 %v279
        %564 = vmatprep.subr.bf16.mxu0 0
        %565 = vmatpush1.bf16.msra.mxu0 %v278
        %566 = vmatprep.subr.bf16.mxu0 0
        %567 = vmatpush2.bf16.msra.mxu0 0
        %568 = vmatprep.subr.bf16.mxu0 0
        %569 = vmatpush2.bf16.msra.mxu0 0
        %570 = vmatprep.subr.bf16.mxu0 0
        %571 = vmatpush2.bf16.msra.mxu0 0
        %572 = vmatprep.subr.bf16.mxu0 0
        %573 = vmatpush2.bf16.msra.mxu0 0
        %574 = vmatprep.subr.bf16.mxu0 0
        %575 = vmatpush2.bf16.msra.mxu0 0
        %576 = vmatprep.subr.bf16.mxu0 0
        %577 = vmatpush2.bf16.msra.mxu0 0
        %578 = vmatprep.subr.bf16.mxu0 0
        %579 = vmatpush2.bf16.msra.mxu0 0
        %580 = vmatprep.subr.bf16.mxu0 0
        %581 = vmatpush2.bf16.msra.mxu0 0
        %582 = vmatprep.mubr.bf16.mxu0 0
        %583 = vmatmul.mubr.bf16.gmra.mxu0 %v548
        %v584 = vpop.f32.mrf.mxu0
        %v585 = vadd.f32 0.0, %v584
        %v586 = vpop.f32.mrf.mxu0
        %v587 = vpop.f32.mrf.mxu0
        %v588 = vpop.f32.mrf.mxu0
        %589 = vdwg.mxu0
        %v590 = vadd.f32 %v544, %v585
        %v591 = vxor.u32 %v590, 2147483648
        %v592 = vmul.f32 %v591, 1.442695
        %v593 = vpow.pop %v592
        %v594 = vadd.f32 %v593, 1.0
        %v595 = vrcp.pop %v594
        %v596 = vmul.f32 1.0, %v595
        %v597 = vtanh.pop %v590
        %v598 = vld [vmem:[#allocation3] sm:$0xff]
        %600 = vrot.lane.b32.xlu0 %v598, 32
        %v601 = vpop.permute.xlu0 %600
        %v603 = vmul.f32 %v596, %v601
        %605 = vrot.lane.b32.xlu0 %v597, 64
        %v606 = vpop.permute.xlu0 %605
        %v608 = vmul.f32 %v596, %v606
        %610 = vrot.lane.b32.xlu0 %v608, 32
        %v611 = vpop.permute.xlu0 %610
        %v613 = vadd.f32 %v603, %v611
        %v614 = vtanh.pop %v613
        %616 = vrot.lane.b32.xlu0 %v614, 64
        %v617 = vpop.permute.xlu0 %616
        %v619 = vmul.f32 %v596, %v617
        %621 = vrot.lane.b32.xlu0 %v613, 96
        %v622 = vpop.permute.xlu0 %621
        %624 = vst.msk [vmem:[#allocation3] sm:$0xff] %vm282, %v622
        %626 = vrot.lane.b32.xlu0 %v619, 32
        %v627 = vpop.permute.xlu0 %626
        %629 = vst.msk [vmem:[#allocation2] sm:$0xff] %vm282, %v627
        %p630 = scmp.eq.s32.totalorder %s25, 1
        // Predicated region
        $region53: #{tpu_custom_call.1} parent=35 // pred_check
          %p631 = pneg %p630
        $region54: #{tpu_custom_call.1} parent=35 // pred_check_branch
          %633 = sbr.rel (%p631) target = $region56
        $region55: #{tpu_custom_call.1} parent=35 // pred_region
          %v634 = vld [vmem:[#allocation2] sm:$0xff]
          %v635 = vpack.c.bf16 %v634, %v634
          %v636 = vld [vmem:[#allocation9] sm:$0xf]
          %v637 = vld [vmem:[#allocation9 + $0x4] sm:$0xf]
          %v638 = vld [vmem:[#allocation9 + $0x8] sm:$0xf]
          %v639 = vld [vmem:[#allocation9 + $0xc] sm:$0xf]
          %v640 = vld [vmem:[%s3] sm:$0x1]
          %v642 = vlaneseq
          %v643 = vshrl.u32 %v642, 7
          %v644 = vsub.s32 0, %v643
          %v645 = vrot.slane %v640, %v644
          %v651 = vunpack.c.l.b16 %v636
          %v652 = vunpack.c.l.b16 %v637
          %v653 = vunpack.c.l.b16 %v638
          %v654 = vunpack.c.l.b16 %v639
          %v655 = vpack.c.b16 %v652, %v651
          %v656 = vpack.c.b16 %v654, %v653
          %v660 = vsel %vm282, %v635, 0
          %662 = vmatprep.subr.bf16.mxu0 0
          %663 = vmatpush1.bf16.msra.mxu0 0
          %664 = vmatprep.subr.bf16.mxu0 0
          %665 = vmatpush1.bf16.msra.mxu0 0
          %666 = vmatprep.subr.bf16.mxu0 0
          %667 = vmatpush1.bf16.msra.mxu0 0
          %668 = vmatprep.subr.bf16.mxu0 0
          %669 = vmatpush1.bf16.msra.mxu0 0
          %670 = vmatprep.subr.bf16.mxu0 0
          %671 = vmatpush1.bf16.msra.mxu0 0
          %672 = vmatprep.subr.bf16.mxu0 0
          %673 = vmatpush1.bf16.msra.mxu0 0
          %674 = vmatprep.subr.bf16.mxu0 0
          %675 = vmatpush1.bf16.msra.mxu0 %v656
          %676 = vmatprep.subr.bf16.mxu0 0
          %677 = vmatpush1.bf16.msra.mxu0 %v655
          %678 = vmatprep.subr.bf16.mxu0 0
          %679 = vmatpush2.bf16.msra.mxu0 0
          %680 = vmatprep.subr.bf16.mxu0 0
          %681 = vmatpush2.bf16.msra.mxu0 0
          %682 = vmatprep.subr.bf16.mxu0 0
          %683 = vmatpush2.bf16.msra.mxu0 0
          %684 = vmatprep.subr.bf16.mxu0 0
          %685 = vmatpush2.bf16.msra.mxu0 0
          %686 = vmatprep.subr.bf16.mxu0 0
          %687 = vmatpush2.bf16.msra.mxu0 0
          %688 = vmatprep.subr.bf16.mxu0 0
          %689 = vmatpush2.bf16.msra.mxu0 0
          %690 = vmatprep.subr.bf16.mxu0 0
          %691 = vmatpush2.bf16.msra.mxu0 0
          %692 = vmatprep.subr.bf16.mxu0 0
          %693 = vmatpush2.bf16.msra.mxu0 0
          %694 = vmatprep.mubr.bf16.mxu0 0
          %695 = vmatmul.mubr.bf16.gmra.mxu0 %v660
          %v696 = vpop.f32.mrf.mxu0
          %v697 = vadd.f32 %v645, %v696
          %v698 = vpop.f32.mrf.mxu0
          %v699 = vpop.f32.mrf.mxu0
          %v700 = vpop.f32.mrf.mxu0
          %701 = vdwg.mxu0
          %702 = vst [vmem:[#allocation10] sm:$0xff] %v697
        $region56: #{tpu_custom_call.1} parent=35 // pred_fallthru
          _
        // Predicated region
        $region57: #{tpu_custom_call.1} parent=35 // pred_check
          %p703 = pneg %p141
        $region58: #{tpu_custom_call.1} parent=35 // pred_check_branch
          %705 = sbr.rel (%p703) target = $region60
        $region59: #{tpu_custom_call.1} parent=35 // pred_region
          %s707 = ssub.s32 128, 128
          %708 = vsyncadd [#allocation6], %s707
          %s709 = smul.addr %s24, 128
          %s710 = scalar_lea.hbm %s4, %s709
          %s712 = sshll.u32 [#allocation10], 4
          %s713 = int_to_ptr.vmem [resolvable:$true] %s712
          %715 = dma.vmem_to_hbm [thread:$0]  %s713, 128, %s710, [#allocation6]
        $region60: #{tpu_custom_call.1} parent=35 // pred_fallthru
          _
        // Predicated region
        $region61: #{tpu_custom_call.1} parent=35 // pred_check
          %p716 = pneg %p141
        $region62: #{tpu_custom_call.1} parent=35 // pred_check_branch
          %718 = sbr.rel (%p716) target = $region64
        $region63: #{tpu_custom_call.1} parent=35 // pred_region
          %719 = dma.done [#allocation6], 128
        $region64: #{tpu_custom_call.1} parent=35 // pred_fallthru
          _
      $region36: #{tpu_custom_call.1} parent=5 // pred_fallthru
        _
      %p720 = scmp.le.s32.totalorder 2, %s15
      // Predicated region
      $region65: #{tpu_custom_call.1} parent=5 // pred_check
        %p721 = pneg %p720
      $region66: #{tpu_custom_call.1} parent=5 // pred_check_branch
        %723 = sbr.rel (%p721) target = $region68
      $region67: #{tpu_custom_call.1} parent=5 // pred_region
        %s724 = ssub.s32 %s15, 2
      $region68: #{tpu_custom_call.1} parent=5 // pred_fallthru
        _
    $region6: #{tpu_custom_call.1} parent=1 // loop_footer
      %s19 = sadd.s32 1, %s15
    $region7: #{tpu_custom_call.1} parent=1 // loop_footer_branch
      %14 = sbr.rel target = $region3
    $region8: #{tpu_custom_call.1} parent=1 // loop_exit
      _
    %725 = vsyncpa [#allocation5], 1
    %s726 = scalar_lea.sflag [#allocation5], 1
    %727 = vsyncpa %s726, 1
    %728 = vsyncpa [#allocation8], 1
    %729 = vsyncpa [#allocation6], 1
    %s730 = scalar_lea.sflag [#allocation6], 1
    %731 = vsyncpa %s730, 1

</llo_original>
